<compile_context>
chip_gen: v6e
topology: v6e:2x2x1
jax: 0.10.0
libtpu: 0.0.40
codegen_flags: <defaults>
</compile_context>

<pallas_src>
import jax
import jax.numpy as jnp
from jax.experimental import pallas as pl
from jax.experimental.pallas import tpu as pltpu


def sparse_mlp_kernel(expert_ids_ref, x_ref, w1_ref, w2_ref, o_ref, acc_ref):
    # x_ref  : (TM, H)   bf16 token tile (same block across the FFN axis)
    # w1_ref : (TF, H)   bf16 expert w1 chunk (expert dim squeezed away)
    # w2_ref : (TF, H)   bf16 expert w2 chunk
    # o_ref  : (TM, H)   output tile (written once, at the last FFN chunk)
    # acc_ref: (TM, H)   f32 accumulator scratch
    f = pl.program_id(1)

    @pl.when(f == 0)
    def _():
        acc_ref[...] = jnp.zeros_like(acc_ref)

    x = x_ref[...]
    w1 = w1_ref[...]
    w2 = w2_ref[...]

    # sdd(x, w1.t(), topo) restricted to this row block / FFN chunk:
    # contract on H directly (no .T -> no XLU transpose of the weight tile).
    h = jax.lax.dot_general(
        x, w1,
        dimension_numbers=(((1,), (1,)), ((), ())),
        preferred_element_type=jnp.float32)                 # (TM, TF) f32
    # megablocks gelu: F.gelu(..., approximate="tanh"); keep f32 (EUP slot).
    h = jax.nn.gelu(h, approximate=True)
    # dsd(gelu(h), w2) restricted to this chunk; accumulate in f32.
    acc_ref[...] += jnp.dot(h.astype(jnp.bfloat16), w2,
                            preferred_element_type=jnp.float32)

    @pl.when(f == pl.num_programs(1) - 1)
    def _():
        o_ref[...] = acc_ref[...].astype(o_ref.dtype)


def sparse_mlp(x, w1, w2, expert_ids, *, block_size=128, ffn_chunk=None):
    """x: [T, H], w1/w2: [E, FFN, H], expert_ids: [T // block_size] i32."""
    T, H = x.shape
    E, FFN, H2 = w1.shape
    assert H == H2 and T % block_size == 0
    assert expert_ids.shape[0] == T // block_size
    assert H % 128 == 0 and block_size % 8 == 0
    n_blocks = T // block_size

    if ffn_chunk is None:
        ffn_chunk = min(FFN, 512)
    assert FFN % ffn_chunk == 0 and (ffn_chunk % 8 == 0 or ffn_chunk == FFN)
    n_ffn = FFN // ffn_chunk

    out_dtype = x.dtype
    out_itemsize = jnp.dtype(out_dtype).itemsize

    # bf16 MXU operands (f32 accumulation happens inside the kernel).
    xb = x.astype(jnp.bfloat16)
    w1b = w1.astype(jnp.bfloat16)
    w2b = w2.astype(jnp.bfloat16)

    grid_spec = pltpu.PrefetchScalarGridSpec(
        num_scalar_prefetch=1,              # expert_ids lands in SMEM for index_maps
        grid=(n_blocks, n_ffn),             # FFN reduction axis innermost
        in_specs=[
            pl.BlockSpec((block_size, H), lambda i, f, eids: (i, 0)),
            pl.BlockSpec((None, ffn_chunk, H), lambda i, f, eids: (eids[i], f, 0)),
            pl.BlockSpec((None, ffn_chunk, H), lambda i, f, eids: (eids[i], f, 0)),
        ],
        out_specs=pl.BlockSpec((block_size, H), lambda i, f, eids: (i, 0)),
        scratch_shapes=[pltpu.VMEM((block_size, H), jnp.float32)],
    )

    # VMEM budget: double-buffered weight chunks + x/out tiles + accumulator + h,
    # with headroom; never below the 32 MiB default, kept inside v7x's 64 MiB.
    w_bytes = 2 * 2 * ffn_chunk * H * 2                 # w1+w2, 2 buffers, bf16
    io_bytes = 2 * block_size * H * (2 + out_itemsize)  # x (bf16) + out, 2 buffers
    live_bytes = block_size * H * 4 + block_size * ffn_chunk * 4
    vmem_limit = min(max(int(1.5 * (w_bytes + io_bytes + live_bytes)) + (2 << 20),
                         32 << 20), 60 << 20)

    cost = pl.CostEstimate(
        flops=4 * T * FFN * H,
        transcendentals=T * FFN,
        bytes_accessed=int(xb.size * 2 + T * H * out_itemsize
                           + (w1b.size + w2b.size) * 2),
    )

    return pl.pallas_call(
        sparse_mlp_kernel,
        out_shape=jax.ShapeDtypeStruct((T, H), out_dtype),
        grid_spec=grid_spec,
        compiler_params=pltpu.CompilerParams(
            dimension_semantics=("parallel", "arbitrary"),
            vmem_limit_bytes=vmem_limit,
        ),
        cost_estimate=cost,
    )(expert_ids, xb, w1b, w2b)


def sparse_mlp_reference(x, w1, w2, expert_ids, *, block_size=128):
    # Pure-JAX reference with the same bf16-operand / f32-accumulate math.
    outs = []
    for i in range(x.shape[0] // block_size):
        xt = x[i * block_size:(i + 1) * block_size].astype(jnp.bfloat16)
        e = int(expert_ids[i])
        h = jax.lax.dot_general(
            xt, w1[e].astype(jnp.bfloat16),
            dimension_numbers=(((1,), (1,)), ((), ())),
            preferred_element_type=jnp.float32)
        h = jax.nn.gelu(h, approximate=True)
        o = jnp.dot(h.astype(jnp.bfloat16), w2[e].astype(jnp.bfloat16),
                    preferred_element_type=jnp.float32)
        outs.append(o)
    return jnp.concatenate(outs, axis=0).astype(x.dtype)


if __name__ == "__main__":
    # Small, deterministic synthetic config (single rank, no parallelism):
    #   num_experts=2, ffn_hidden_size=256, hidden_size=128,
    #   4 row-blocks of 128 tokens (512 tokens), 2 blocks per expert.
    E, FFN, H = 2, 256, 128
    TM = 128
    n_blocks = 4
    T = n_blocks * TM

    key = jax.random.PRNGKey(0)
    k1, k2, k3 = jax.random.split(key, 3)
    # init_method / output_layer_init_method stand-in: scaled normal init.
    w1 = 0.02 * jax.random.normal(k1, (E, FFN, H), jnp.float32)
    w2 = 0.02 * jax.random.normal(k2, (E, FFN, H), jnp.float32)
    x = jax.random.normal(k3, (T, H), jnp.float32)
    expert_ids = jnp.array([0, 0, 1, 1], dtype=jnp.int32)   # per-row-block expert

    # ffn_chunk=128 exercises the multi-chunk accumulation path (FFN=256 -> 2 chunks).
    out = sparse_mlp(x, w1, w2, expert_ids, block_size=TM, ffn_chunk=128)
    out = jax.block_until_ready(out)

    ref = sparse_mlp_reference(x, w1, w2, expert_ids, block_size=TM)
    assert out.shape == (T, H) and out.dtype == x.dtype
    max_err = float(jnp.max(jnp.abs(out - ref)))
    assert jnp.allclose(out, ref, atol=2e-3, rtol=2e-2), (
        f"mismatch vs reference, max abs err={max_err}")

    print("KERNEL_OK")
</pallas_src>

<mosaic_0001>
module attributes {stable_mosaic.version = 11 : i64} {
  func.func @sparse_mlp_kernel(%arg0: i32, %arg1: i32, %arg2: memref<4xi32, #tpu.memory_space<smem>>, %arg3: memref<128x128xbf16, #tpu.memory_space<vmem>>, %arg4: memref<1x128x128xbf16, #tpu.memory_space<vmem>>, %arg5: memref<1x128x128xbf16, #tpu.memory_space<vmem>>, %arg6: memref<128x128xf32, #tpu.memory_space<vmem>>, %arg7: memref<128x128xf32, #tpu.memory_space<vmem>>) attributes {dimension_semantics = [#tpu.dimension_semantics<parallel>, #tpu.dimension_semantics<arbitrary>], iteration_bounds = array<i64: 4, 2>, scalar_prefetch = 1 : i64, scratch_operands = 1 : i64, tpu.core_type = #tpu.core_type<tc>, window_params = [{transform_indices = @transform_0, window_bounds = array<i64: 128, 128>}, {transform_indices = @transform_1, window_bounds = array<i64: 1, 128, 128>}, {transform_indices = @transform_2, window_bounds = array<i64: 1, 128, 128>}, {transform_indices = @transform_3, window_bounds = array<i64: 128, 128>}]} {
    %c0_i32 = arith.constant 0 : i32
    %0 = arith.cmpi eq, %arg1, %c0_i32 : i32
    %1 = arith.extui %0 : i1 to i32
    %c0_i32_0 = arith.constant 0 : i32
    %2 = arith.cmpi ne, %1, %c0_i32_0 : i32
    scf.if %2 {
      %cst_18 = arith.constant 0.000000e+00 : f32
      %30 = vector.broadcast %cst_18 : f32 to vector<128x128xf32>
      %c0_19 = arith.constant 0 : index
      %c0_20 = arith.constant 0 : index
      %31 = vector.load %arg7[%c0_19, %c0_20] : memref<128x128xf32, #tpu.memory_space<vmem>>, vector<128x128xf32>
      tpu.vector_store %arg7[%c0_19, %c0_20], %30 {strides = array<i32>} : memref<128x128xf32, #tpu.memory_space<vmem>>, vector<128x128xf32>,
    } else {
    }
    %c0 = arith.constant 0 : index
    %c0_1 = arith.constant 0 : index
    %3 = vector.load %arg3[%c0, %c0_1] : memref<128x128xbf16, #tpu.memory_space<vmem>>, vector<128x128xbf16>
    %c0_2 = arith.constant 0 : index
    %c0_3 = arith.constant 0 : index
    %c0_4 = arith.constant 0 : index
    %4 = vector.load %arg4[%c0_2, %c0_3, %c0_4] : memref<1x128x128xbf16, #tpu.memory_space<vmem>>, vector<1x128x128xbf16>
    %5 = vector.shape_cast %4 : vector<1x128x128xbf16> to vector<128x128xbf16>
    %c0_5 = arith.constant 0 : index
    %c0_6 = arith.constant 0 : index
    %c0_7 = arith.constant 0 : index
    %6 = vector.load %arg5[%c0_5, %c0_6, %c0_7] : memref<1x128x128xbf16, #tpu.memory_space<vmem>>, vector<1x128x128xbf16>
    %7 = vector.shape_cast %6 : vector<1x128x128xbf16> to vector<128x128xbf16>
    %cst = arith.constant dense<0.000000e+00> : vector<128x128xf32>
    %8 = tpu.matmul %3, %5, %cst {dimension_numbers = #tpu.dot_dimension_numbers<[1], [1], [0], [0], [0, 0, 1, 0], [], []>} : vector<128x128xbf16>, vector<128x128xbf16>, vector<128x128xf32> -> vector<128x128xf32>
    %9 = arith.mulf %8, %8 : vector<128x128xf32>
    %10 = arith.mulf %8, %9 : vector<128x128xf32>
    %cst_8 = arith.constant 4.471500e-02 : f32
    %11 = vector.broadcast %cst_8 : f32 to vector<128x128xf32>
    %12 = arith.mulf %11, %10 : vector<128x128xf32>
    %13 = arith.addf %8, %12 : vector<128x128xf32>
    %cst_9 = arith.constant 0.797884583 : f32
    %14 = vector.broadcast %cst_9 : f32 to vector<128x128xf32>
    %15 = arith.mulf %14, %13 : vector<128x128xf32>
    %16 = math.tanh %15 : vector<128x128xf32>
    %cst_10 = arith.constant 1.000000e+00 : f32
    %17 = vector.broadcast %cst_10 : f32 to vector<128x128xf32>
    %18 = arith.addf %17, %16 : vector<128x128xf32>
    %cst_11 = arith.constant 5.000000e-01 : f32
    %19 = vector.broadcast %cst_11 : f32 to vector<128x128xf32>
    %20 = arith.mulf %19, %18 : vector<128x128xf32>
    %21 = arith.mulf %8, %20 : vector<128x128xf32>
    %c0_12 = arith.constant 0 : index
    %c0_13 = arith.constant 0 : index
    %22 = vector.load %arg7[%c0_12, %c0_13] : memref<128x128xf32, #tpu.memory_space<vmem>>, vector<128x128xf32>
    %23 = arith.truncf %21 : vector<128x128xf32> to vector<128x128xbf16>
    %cst_14 = arith.constant dense<0.000000e+00> : vector<128x128xf32>
    %24 = tpu.matmul %23, %7, %cst_14 {dimension_numbers = #tpu.dot_dimension_numbers<[1], [0], [0], [1], [0, 0, 1, 1], [], []>} : vector<128x128xbf16>, vector<128x128xbf16>, vector<128x128xf32> -> vector<128x128xf32>
    %25 = arith.addf %22, %24 : vector<128x128xf32>
    %c0_15 = arith.constant 0 : index
    %c0_16 = arith.constant 0 : index
    %26 = vector.load %arg7[%c0_15, %c0_16] : memref<128x128xf32, #tpu.memory_space<vmem>>, vector<128x128xf32>
    tpu.vector_store %arg7[%c0_15, %c0_16], %25 {strides = array<i32>} : memref<128x128xf32, #tpu.memory_space<vmem>>, vector<128x128xf32>,
    %c1_i32 = arith.constant 1 : i32
    %27 = arith.cmpi eq, %arg1, %c1_i32 : i32
    %28 = arith.extui %27 : i1 to i32
    %c0_i32_17 = arith.constant 0 : i32
    %29 = arith.cmpi ne, %28, %c0_i32_17 : i32
    scf.if %29 {
      %c0_18 = arith.constant 0 : index
      %c0_19 = arith.constant 0 : index
      %30 = vector.load %arg7[%c0_18, %c0_19] : memref<128x128xf32, #tpu.memory_space<vmem>>, vector<128x128xf32>
      %c0_20 = arith.constant 0 : index
      %c0_21 = arith.constant 0 : index
      %31 = vector.load %arg6[%c0_20, %c0_21] : memref<128x128xf32, #tpu.memory_space<vmem>>, vector<128x128xf32>
      tpu.vector_store %arg6[%c0_20, %c0_21], %30 {strides = array<i32>} : memref<128x128xf32, #tpu.memory_space<vmem>>, vector<128x128xf32>,
    } else {
    }
    return
  }
  func.func @transform_0(%arg0: i32, %arg1: i32, %arg2: memref<4xi32, #tpu.memory_space<smem>>) -> (i32, i32) {
    %c0_i32 = arith.constant 0 : i32
    %c0_i32_0 = arith.constant 0 : i32
    return %arg0, %c0_i32 : i32, i32
  }
  func.func @transform_1(%arg0: i32, %arg1: i32, %arg2: memref<4xi32, #tpu.memory_space<smem>>) -> (i32, i32, i32) {
    %0 = arith.index_cast %arg0 : i32 to index
    %1 = memref.load %arg2[%0] : memref<4xi32, #tpu.memory_space<smem>>
    %c0_i32 = arith.constant 0 : i32
    %c0_i32_0 = arith.constant 0 : i32
    return %1, %arg1, %c0_i32 : i32, i32, i32
  }
  func.func @transform_2(%arg0: i32, %arg1: i32, %arg2: memref<4xi32, #tpu.memory_space<smem>>) -> (i32, i32, i32) {
    %0 = arith.index_cast %arg0 : i32 to index
    %1 = memref.load %arg2[%0] : memref<4xi32, #tpu.memory_space<smem>>
    %c0_i32 = arith.constant 0 : i32
    %c0_i32_0 = arith.constant 0 : i32
    return %1, %arg1, %c0_i32 : i32, i32, i32
  }
  func.func @transform_3(%arg0: i32, %arg1: i32, %arg2: memref<4xi32, #tpu.memory_space<smem>>) -> (i32, i32) {
    %c0_i32 = arith.constant 0 : i32
    %c0_i32_0 = arith.constant 0 : i32
    return %arg0, %c0_i32 : i32, i32
  }
}

</mosaic_0001>

<llo_original>
// kernel: tpu_custom_call.1
$region0: #{tpu_custom_call.1}
  #allocation0 [shape = 'u32[]', space=smem, size = 0x4, offset = 0x4, fixed_abs, tag = 'smem constant byte address 0x4 - core index']
  #allocation1 [shape = 'u32[144,128]{1,0:T(1,128)}', space=vmem, size = 0x12000, scoped, tag = 'internal scratch']
  #allocation2 [shape = 'f32[128,128]{1,0:T(8,128)}', space=vmem, size = 0x10000, scoped, tag = 'scratch operand']
  #allocation3 [shape = 's32[1]{0}', space=sflag, size = 0x4, scoped, tag = 'scoped memory for tpu_custom_call.1']
  #allocation4 [shape = 'u8[512]{0}', space=smem, size = 0x200, scoped, tag = 'prefetched SMEM operand 0']
  %s0 = inlined_call_operand.hbm [shape: s32[4], index: 0, kind: input, shape index: {}]
  %s1 = inlined_call_operand.hbm [shape: bf16[512,128], index: 1, kind: input, shape index: {}]
  %s2 = inlined_call_operand.hbm [shape: bf16[2,256,128], index: 2, kind: input, shape index: {}]
  %s3 = inlined_call_operand.hbm [shape: bf16[2,256,128], index: 3, kind: input, shape index: {}]
  %s4 = inlined_call_operand.hbm [shape: f32[512,128], index: 4, kind: output, shape index: {}]
  %s5 = sld [smem:[#allocation0]]
  $region65: #{tpu_custom_call.1} parent=0
    _
  %s7 = ssub.s32 1, %s5
  %s8 = scalar_select 0, %s7, %s5
  %10 = dma.hbm_to_smem %s0, 16, [#allocation4], [#allocation3]
  %11 = dma.done [#allocation3], 16
  %12 = sfence
  $region1: #{tpu_custom_call.1} parent=0
    #allocation5 [shape = 'u8[65536]{0}', space=vmem, size = 0x10000, scoped, tag = 'input window, operand 1']
    #allocation6 [shape = 's32[2]{0}', space=sflag, size = 0x8, scoped, tag = 'scoped memory for tpu_custom_call.1']
    #allocation7 [shape = 's32[2]{0}', space=sflag, size = 0x8, scoped, tag = 'scoped memory for tpu_custom_call.1']
    #allocation8 [shape = 'u8[65536]{0}', space=vmem, size = 0x10000, scoped, tag = 'input window, operand 2']
    #allocation9 [shape = 's32[2]{0}', space=sflag, size = 0x8, scoped, tag = 'scoped memory for tpu_custom_call.1']
    #allocation10 [shape = 'u8[65536]{0}', space=vmem, size = 0x10000, scoped, tag = 'input window, operand 3']
    #allocation11 [shape = 'u8[131072]{0}', space=vmem, size = 0x20000, scoped, tag = 'output window, operand 0']
    %13 = vsyncpa [#allocation6], 0
    %s14 = scalar_lea.sflag [#allocation6], 1
    %15 = vsyncpa %s14, 0
    %16 = vsyncpa [#allocation9], 0
    %s17 = scalar_lea.sflag [#allocation9], 1
    %18 = vsyncpa %s17, 0
    %19 = vsyncpa [#allocation7], 0
    %s20 = scalar_lea.sflag [#allocation7], 1
    %21 = vsyncpa %s20, 0
    loop: start=0, step=1, limit=10
    $region2: #{tpu_custom_call.1} parent=1 // loop_pre_header
      _
    $region3: #{tpu_custom_call.1} parent=1 // loop_header
      %s23 = sphi 0, %s27
      %p24 = scmp.ge.s32.totalorder %s23, 10
      %s30 = sphi 0, %s42
      %s31 = sphi 0, %s38
      %s32 = sphi 0, %s30
      %s33 = sphi 0, %s31
      %s34 = sphi 0, %s32
      %s35 = sphi 0, %s33
      %s45 = sphi 0, %s47
      %s48 = sphi 0, %s45
      %s49 = sphi 0, %s48
      %s65 = sphi 0, %s49
      %s75 = sphi 0, %s77
      %s78 = sphi 0, %s75
      %s79 = sphi 0, %s78
      %s95 = sphi 0, %s79
      %s105 = sphi 0, %s107
      %s108 = sphi 0, %s105
      %s109 = sphi 0, %s108
      %s125 = sphi 0, %s109
      %s131 = sphi 0, %s133
      %s134 = sphi 0, %s131
      %s135 = sphi 0, %s134
      %s151 = sphi 0, %s135
    $region4: #{tpu_custom_call.1} parent=1 // loop_header_branch
      %26 = sbr.rel (%p24) target = $region8
    $region5: #{tpu_custom_call.1} parent=1 // loop_body
      %s28 = ssub.s32 %s23, 1
      %s29 = ssub.s32 %s23, 2
      %s36 = sadd.s32 1, %s31
      %p37 = scmp.ge.s32.totalorder %s36, 2
      %s38 = scalar_select %p37, 0, %s36
      %s39 = sadd.s32 1, %s30
      %s40 = scalar_select %p37, %s39, %s30
      %p41 = scmp.ge.s32.totalorder %s40, 4
      %s42 = scalar_select %p41, 0, %s40
      %s43 = ssub.s32 %s30, %s42
      %p44 = scmp.eq.s32.totalorder %s43, 0
      %s46 = sadd.s32 %s45, 1
      %s47 = scalar_select %p44, %s45, %s46
      %p50 = pneg %p44
      %p51 = scmp.eq.s32.totalorder %s23, 7
      %p52 = por %p50, %p51
      %p53 = scmp.ne.s32.totalorder %s45, %s48
      %p54 = scmp.eq.s32.totalorder %s23, 0
      %p55 = por %p53, %p54
      %p56 = scmp.ne.s32.totalorder %s45, %s48
      %p57 = scmp.eq.s32.totalorder %s28, 7
      %p58 = por %p56, %p57
      %p59 = scmp.ne.s32.totalorder %s48, %s49
      %p60 = scmp.eq.s32.totalorder %s28, 0
      %p61 = por %p59, %p60
      %p62 = scmp.ne.s32.totalorder %s48, %s49
      %p63 = scmp.eq.s32.totalorder %s29, 7
      %p64 = por %p62, %p63
      %p66 = scmp.ne.s32.totalorder %s49, %s65
      %p67 = scmp.eq.s32.totalorder %s29, 0
      %p68 = por %p66, %p67
      %s69 = sld [smem:[#allocation4 + %s30]]
      %s70 = sld [smem:[#allocation4 + %s42]]
      %s71 = ssub.s32 %s69, %s70
      %s72 = ssub.s32 %s31, %s38
      %s73 = sor.u32 %s71, %s72
      %p74 = scmp.eq.s32.totalorder %s73, 0
      %s76 = sadd.s32 %s75, 1
      %s77 = scalar_select %p74, %s75, %s76
      %p80 = pneg %p74
      %p81 = scmp.eq.s32.totalorder %s23, 7
      %p82 = por %p80, %p81
      %p83 = scmp.ne.s32.totalorder %s75, %s78
      %p84 = scmp.eq.s32.totalorder %s23, 0
      %p85 = por %p83, %p84
      %p86 = scmp.ne.s32.totalorder %s75, %s78
      %p87 = scmp.eq.s32.totalorder %s28, 7
      %p88 = por %p86, %p87
      %p89 = scmp.ne.s32.totalorder %s78, %s79
      %p90 = scmp.eq.s32.totalorder %s28, 0
      %p91 = por %p89, %p90
      %p92 = scmp.ne.s32.totalorder %s78, %s79
      %p93 = scmp.eq.s32.totalorder %s29, 7
      %p94 = por %p92, %p93
      %p96 = scmp.ne.s32.totalorder %s79, %s95
      %p97 = scmp.eq.s32.totalorder %s29, 0
      %p98 = por %p96, %p97
      %s99 = sld [smem:[#allocation4 + %s30]]
      %s100 = sld [smem:[#allocation4 + %s42]]
      %s101 = ssub.s32 %s99, %s100
      %s102 = ssub.s32 %s31, %s38
      %s103 = sor.u32 %s101, %s102
      %p104 = scmp.eq.s32.totalorder %s103, 0
      %s106 = sadd.s32 %s105, 1
      %s107 = scalar_select %p104, %s105, %s106
      %p110 = pneg %p104
      %p111 = scmp.eq.s32.totalorder %s23, 7
      %p112 = por %p110, %p111
      %p113 = scmp.ne.s32.totalorder %s105, %s108
      %p114 = scmp.eq.s32.totalorder %s23, 0
      %p115 = por %p113, %p114
      %p116 = scmp.ne.s32.totalorder %s105, %s108
      %p117 = scmp.eq.s32.totalorder %s28, 7
      %p118 = por %p116, %p117
      %p119 = scmp.ne.s32.totalorder %s108, %s109
      %p120 = scmp.eq.s32.totalorder %s28, 0
      %p121 = por %p119, %p120
      %p122 = scmp.ne.s32.totalorder %s108, %s109
      %p123 = scmp.eq.s32.totalorder %s29, 7
      %p124 = por %p122, %p123
      %p126 = scmp.ne.s32.totalorder %s109, %s125
      %p127 = scmp.eq.s32.totalorder %s29, 0
      %p128 = por %p126, %p127
      %s129 = ssub.s32 %s30, %s42
      %p130 = scmp.eq.s32.totalorder %s129, 0
      %s132 = sadd.s32 %s131, 1
      %s133 = scalar_select %p130, %s131, %s132
      %p136 = pneg %p130
      %p137 = scmp.eq.s32.totalorder %s23, 7
      %p138 = por %p136, %p137
      %p139 = scmp.ne.s32.totalorder %s131, %s134
      %p140 = scmp.eq.s32.totalorder %s23, 0
      %p141 = por %p139, %p140
      %p142 = scmp.ne.s32.totalorder %s131, %s134
      %p143 = scmp.eq.s32.totalorder %s28, 7
      %p144 = por %p142, %p143
      %p145 = scmp.ne.s32.totalorder %s134, %s135
      %p146 = scmp.eq.s32.totalorder %s28, 0
      %p147 = por %p145, %p146
      %p148 = scmp.ne.s32.totalorder %s134, %s135
      %p149 = scmp.eq.s32.totalorder %s29, 7
      %p150 = por %p148, %p149
      %p152 = scmp.ne.s32.totalorder %s135, %s151
      %p153 = scmp.eq.s32.totalorder %s29, 0
      %p154 = por %p152, %p153
      %p155 = scmp.le.s32.totalorder 1, %s23
      %p156 = scmp.lt.s32.totalorder %s23, 9
      %p157 = pnand %p155, %p156
      %p158 = pneg %p157
      // Predicated region
      $region9: #{tpu_custom_call.1} parent=5 // pred_check
        _
      $region10: #{tpu_custom_call.1} parent=5 // pred_check_branch
        %160 = sbr.rel (%p157) target = $region12
      $region11: #{tpu_custom_call.1} parent=5 // pred_region
        %s161 = ssub.s32 %s23, 1
      $region12: #{tpu_custom_call.1} parent=5 // pred_fallthru
        _
      %p162 = scmp.lt.s32.totalorder %s23, 8
      // Predicated region
      $region13: #{tpu_custom_call.1} parent=5 // pred_check
        %p163 = pneg %p162
      $region14: #{tpu_custom_call.1} parent=5 // pred_check_branch
        %165 = sbr.rel (%p163) target = $region16
      $region15: #{tpu_custom_call.1} parent=5 // pred_region
        // Predicated region
        $region17: #{tpu_custom_call.1} parent=15 // pred_check
          %p166 = pneg %p55
        $region18: #{tpu_custom_call.1} parent=15 // pred_check_branch
          %168 = sbr.rel (%p166) target = $region20
        $region19: #{tpu_custom_call.1} parent=15 // pred_region
          %s169 = sand.u32 %s45, 1
          %s170 = scalar_lea.sflag [#allocation6], %s169
          %s171 = sand.u32 %s45, 1
          %s172 = smul.addr %s171, 64
          %s173 = scalar_lea.vmem [#allocation5], %s172
          %s174 = smul.u32 16, %s30
          %s176 = ssub.s32 1024, 1024
          %177 = vsyncadd %s170, %s176
          %s178 = smul.addr %s174, 64
          %s179 = scalar_lea.hbm %s1, %s178
          %s180 = sshll.u32 %s173, 4
          %s181 = int_to_ptr.vmem [resolvable:$true] %s180
          %186 = dma.hbm_to_vmem [thread:$0]  %s179, 1024, %s181, %s170, 64, 64, 4
        $region20: #{tpu_custom_call.1} parent=15 // pred_fallthru
          _
        // Predicated region
        $region21: #{tpu_custom_call.1} parent=15 // pred_check
          %p187 = pneg %p85
        $region22: #{tpu_custom_call.1} parent=15 // pred_check_branch
          %189 = sbr.rel (%p187) target = $region24
        $region23: #{tpu_custom_call.1} parent=15 // pred_region
          %s190 = sand.u32 %s23, 1
          %s191 = scalar_lea.sflag [#allocation9], %s190
          %s192 = sand.u32 %s75, 1
          %s193 = smul.addr %s192, 64
          %s194 = scalar_lea.vmem [#allocation8], %s193
          %s195 = sld [smem:[#allocation4 + %s30]]
          %s196 = smul.u32 16, %s31
          %s198 = ssub.s32 1024, 1024
          %199 = vsyncadd %s191, %s198
          %s200 = smul.addr %s195, 32
          %s201 = sadd.s32 %s196, %s200
          %s202 = smul.addr %s201, 64
          %s203 = scalar_lea.hbm %s2, %s202
          %s204 = sshll.u32 %s194, 4
          %s205 = int_to_ptr.vmem [resolvable:$true] %s204
          %210 = dma.hbm_to_vmem [thread:$0]  %s203, 1024, %s205, %s191, 64, 64, 4
        $region24: #{tpu_custom_call.1} parent=15 // pred_fallthru
          _
        // Predicated region
        $region25: #{tpu_custom_call.1} parent=15 // pred_check
          %p211 = pneg %p115
        $region26: #{tpu_custom_call.1} parent=15 // pred_check_branch
          %213 = sbr.rel (%p211) target = $region28
        $region27: #{tpu_custom_call.1} parent=15 // pred_region
          %s214 = sand.u32 %s23, 1
          %s215 = scalar_lea.sflag [#allocation9], %s214
          %s216 = sand.u32 %s105, 1
          %s217 = smul.addr %s216, 64
          %s218 = scalar_lea.vmem [#allocation10], %s217
          %s219 = sld [smem:[#allocation4 + %s30]]
          %s220 = smul.u32 16, %s31
          %s222 = ssub.s32 1024, 1024
          %223 = vsyncadd %s215, %s222
          %s224 = smul.addr %s219, 32
          %s225 = sadd.s32 %s220, %s224
          %s226 = smul.addr %s225, 64
          %s227 = scalar_lea.hbm %s3, %s226
          %s228 = sshll.u32 %s218, 4
          %s229 = int_to_ptr.vmem [resolvable:$true] %s228
          %234 = dma.hbm_to_vmem [thread:$0]  %s227, 1024, %s229, %s215, 64, 64, 4
        $region28: #{tpu_custom_call.1} parent=15 // pred_fallthru
          _
      $region16: #{tpu_custom_call.1} parent=5 // pred_fallthru
        _
      %p235 = scmp.le.s32.totalorder 1, %s23
      %p236 = scmp.lt.s32.totalorder %s23, 9
      %p237 = pnand %p235, %p236
      %p238 = pneg %p237
      // Predicated region
      $region29: #{tpu_custom_call.1} parent=5 // pred_check
        _
      $region30: #{tpu_custom_call.1} parent=5 // pred_check_branch
        %240 = sbr.rel (%p237) target = $region32
      $region31: #{tpu_custom_call.1} parent=5 // pred_region
        %s241 = ssub.s32 %s23, 1
        %s242 = sand.u32 %s48, 1
        %s243 = scalar_lea.sflag [#allocation6], %s242
        %s244 = sand.u32 %s48, 1
        %s245 = smul.addr %s244, 64
        %s246 = scalar_lea.vmem [#allocation5], %s245
        // Predicated region
        $region33: #{tpu_custom_call.1} parent=31 // pred_check
          %p247 = pneg %p61
        $region34: #{tpu_custom_call.1} parent=31 // pred_check_branch
          %249 = sbr.rel (%p247) target = $region36
        $region35: #{tpu_custom_call.1} parent=31 // pred_region
          %250 = dma.done %s243, 1024
        $region36: #{tpu_custom_call.1} parent=31 // pred_fallthru
          _
        %s251 = sand.u32 %s28, 1
        %s252 = scalar_lea.sflag [#allocation9], %s251
        %s253 = sand.u32 %s78, 1
        %s254 = smul.addr %s253, 64
        %s255 = scalar_lea.vmem [#allocation8], %s254
        // Predicated region
        $region37: #{tpu_custom_call.1} parent=31 // pred_check
          %p256 = pneg %p91
        $region38: #{tpu_custom_call.1} parent=31 // pred_check_branch
          %258 = sbr.rel (%p256) target = $region40
        $region39: #{tpu_custom_call.1} parent=31 // pred_region
          %259 = dma.done %s252, 1024
        $region40: #{tpu_custom_call.1} parent=31 // pred_fallthru
          _
        %s260 = sand.u32 %s28, 1
        %s261 = scalar_lea.sflag [#allocation9], %s260
        %s262 = sand.u32 %s108, 1
        %s263 = smul.addr %s262, 64
        %s264 = scalar_lea.vmem [#allocation10], %s263
        // Predicated region
        $region41: #{tpu_custom_call.1} parent=31 // pred_check
          %p265 = pneg %p121
        $region42: #{tpu_custom_call.1} parent=31 // pred_check_branch
          %267 = sbr.rel (%p265) target = $region44
        $region43: #{tpu_custom_call.1} parent=31 // pred_region
          %268 = dma.done %s261, 1024
        $region44: #{tpu_custom_call.1} parent=31 // pred_fallthru
          _
        %s269 = sand.u32 %s48, 1
        %s270 = scalar_lea.sflag [#allocation6], %s269
        %s271 = sand.u32 %s48, 1
        %s272 = smul.addr %s271, 64
        %s273 = scalar_lea.vmem [#allocation5], %s272
        %p274 = pneg %p61
        %p275 = pneg %p58
        %s276 = sand.u32 %s28, 1
        %s277 = scalar_lea.sflag [#allocation9], %s276
        %s278 = sand.u32 %s78, 1
        %s279 = smul.addr %s278, 64
        %s280 = scalar_lea.vmem [#allocation8], %s279
        %p281 = pneg %p91
        %p282 = pneg %p88
        %s283 = sand.u32 %s28, 1
        %s284 = scalar_lea.sflag [#allocation9], %s283
        %s285 = sand.u32 %s108, 1
        %s286 = smul.addr %s285, 64
        %s287 = scalar_lea.vmem [#allocation10], %s286
        %p288 = pneg %p121
        %p289 = pneg %p118
        %p290 = pneg %p147
        %p291 = pneg %p144
        %s292 = sand.u32 %s134, 1
        %s293 = scalar_lea.sflag [#allocation7], %s292
        %s294 = sand.u32 %s134, 1
        %s295 = smul.addr %s294, 128
        %s296 = scalar_lea.vmem [#allocation11], %s295
        %s297 = smul.u32 16, %s32
        %s298 = sld [smem:[#allocation4 + %s32]]
        %s299 = smul.u32 16, %s33
        %s300 = sld [smem:[#allocation4 + %s32]]
        %s301 = smul.u32 16, %s33
        %s302 = smul.u32 16, %s32
        %p304 = scmp.eq.s32.totalorder %s33, 0
        // Predicated region
        $region45: #{tpu_custom_call.1} parent=31 // pred_check
          %p305 = pneg %p304
        $region46: #{tpu_custom_call.1} parent=31 // pred_check_branch
          %307 = sbr.rel (%p305) target = $region48
        $region47: #{tpu_custom_call.1} parent=31 // pred_region
          %308 = vst [vmem:[#allocation2] sm:$0xff] 0.0
          %309 = vst [vmem:[#allocation2 + $0x8] sm:$0xff] 0.0
          %310 = vst [vmem:[#allocation2 + $0x10] sm:$0xff] 0.0
          %311 = vst [vmem:[#allocation2 + $0x18] sm:$0xff] 0.0
          %312 = vst [vmem:[#allocation2 + $0x20] sm:$0xff] 0.0
          %313 = vst [vmem:[#allocation2 + $0x28] sm:$0xff] 0.0
          %314 = vst [vmem:[#allocation2 + $0x30] sm:$0xff] 0.0
          %315 = vst [vmem:[#allocation2 + $0x38] sm:$0xff] 0.0
          %316 = vst [vmem:[#allocation2 + $0x40] sm:$0xff] 0.0
          %317 = vst [vmem:[#allocation2 + $0x48] sm:$0xff] 0.0
          %318 = vst [vmem:[#allocation2 + $0x50] sm:$0xff] 0.0
          %319 = vst [vmem:[#allocation2 + $0x58] sm:$0xff] 0.0
          %320 = vst [vmem:[#allocation2 + $0x60] sm:$0xff] 0.0
          %321 = vst [vmem:[#allocation2 + $0x68] sm:$0xff] 0.0
          %322 = vst [vmem:[#allocation2 + $0x70] sm:$0xff] 0.0
          %323 = vst [vmem:[#allocation2 + $0x78] sm:$0xff] 0.0
        $region48: #{tpu_custom_call.1} parent=31 // pred_fallthru
          _
        %v324 = vld [vmem:[%s246] sm:$0xf]
        %v325 = vld [vmem:[%s246 + $0x4] sm:$0xf]
        %v326 = vld [vmem:[%s246 + $0x8] sm:$0xf]
        %v327 = vld [vmem:[%s246 + $0xc] sm:$0xf]
        %v328 = vld [vmem:[%s246 + $0x10] sm:$0xf]
        %v329 = vld [vmem:[%s246 + $0x14] sm:$0xf]
        %v330 = vld [vmem:[%s246 + $0x18] sm:$0xf]
        %v331 = vld [vmem:[%s246 + $0x1c] sm:$0xf]
        %v332 = vld [vmem:[%s246 + $0x20] sm:$0xf]
        %v333 = vld [vmem:[%s246 + $0x24] sm:$0xf]
        %v334 = vld [vmem:[%s246 + $0x28] sm:$0xf]
        %v335 = vld [vmem:[%s246 + $0x2c] sm:$0xf]
        %v336 = vld [vmem:[%s246 + $0x30] sm:$0xf]
        %v337 = vld [vmem:[%s246 + $0x34] sm:$0xf]
        %v338 = vld [vmem:[%s246 + $0x38] sm:$0xf]
        %v339 = vld [vmem:[%s246 + $0x3c] sm:$0xf]
        %v340 = vld [vmem:[%s255] sm:$0xf]
        %v341 = vld [vmem:[%s255 + $0x4] sm:$0xf]
        %v342 = vld [vmem:[%s255 + $0x8] sm:$0xf]
        %v343 = vld [vmem:[%s255 + $0xc] sm:$0xf]
        %v344 = vld [vmem:[%s255 + $0x10] sm:$0xf]
        %v345 = vld [vmem:[%s255 + $0x14] sm:$0xf]
        %v346 = vld [vmem:[%s255 + $0x18] sm:$0xf]
        %v347 = vld [vmem:[%s255 + $0x1c] sm:$0xf]
        %v348 = vld [vmem:[%s255 + $0x20] sm:$0xf]
        %v349 = vld [vmem:[%s255 + $0x24] sm:$0xf]
        %v350 = vld [vmem:[%s255 + $0x28] sm:$0xf]
        %v351 = vld [vmem:[%s255 + $0x2c] sm:$0xf]
        %v352 = vld [vmem:[%s255 + $0x30] sm:$0xf]
        %v353 = vld [vmem:[%s255 + $0x34] sm:$0xf]
        %v354 = vld [vmem:[%s255 + $0x38] sm:$0xf]
        %v355 = vld [vmem:[%s255 + $0x3c] sm:$0xf]
        %v356 = vld [vmem:[%s264] sm:$0xf]
        %v357 = vld [vmem:[%s264 + $0x4] sm:$0xf]
        %v358 = vld [vmem:[%s264 + $0x8] sm:$0xf]
        %v359 = vld [vmem:[%s264 + $0xc] sm:$0xf]
        %v360 = vld [vmem:[%s264 + $0x10] sm:$0xf]
        %v361 = vld [vmem:[%s264 + $0x14] sm:$0xf]
        %v362 = vld [vmem:[%s264 + $0x18] sm:$0xf]
        %v363 = vld [vmem:[%s264 + $0x1c] sm:$0xf]
        %v364 = vld [vmem:[%s264 + $0x20] sm:$0xf]
        %v365 = vld [vmem:[%s264 + $0x24] sm:$0xf]
        %v366 = vld [vmem:[%s264 + $0x28] sm:$0xf]
        %v367 = vld [vmem:[%s264 + $0x2c] sm:$0xf]
        %v368 = vld [vmem:[%s264 + $0x30] sm:$0xf]
        %v369 = vld [vmem:[%s264 + $0x34] sm:$0xf]
        %v370 = vld [vmem:[%s264 + $0x38] sm:$0xf]
        %v371 = vld [vmem:[%s264 + $0x3c] sm:$0xf]
        %v388 = vunpack.c.l.b16 %v324
        %v389 = vunpack.c.l.b16 %v325
        %v390 = vunpack.c.l.b16 %v326
        %v391 = vunpack.c.l.b16 %v327
        %v392 = vunpack.c.l.b16 %v328
        %v393 = vunpack.c.l.b16 %v329
        %v394 = vunpack.c.l.b16 %v330
        %v395 = vunpack.c.l.b16 %v331
        %v396 = vunpack.c.l.b16 %v332
        %v397 = vunpack.c.l.b16 %v333
        %v398 = vunpack.c.l.b16 %v334
        %v399 = vunpack.c.l.b16 %v335
        %v400 = vunpack.c.l.b16 %v336
        %v401 = vunpack.c.l.b16 %v337
        %v402 = vunpack.c.l.b16 %v338
        %v403 = vunpack.c.l.b16 %v339
        %v404 = vpack.c.b16 %v389, %v388
        %v405 = vpack.c.b16 %v391, %v390
        %v406 = vpack.c.b16 %v393, %v392
        %v407 = vpack.c.b16 %v395, %v394
        %v408 = vpack.c.b16 %v397, %v396
        %v409 = vpack.c.b16 %v399, %v398
        %v410 = vpack.c.b16 %v401, %v400
        %v411 = vpack.c.b16 %v403, %v402
        %v436 = vunpack.c.l.b16 %v340
        %v437 = vunpack.c.l.b16 %v341
        %v438 = vunpack.c.l.b16 %v342
        %v439 = vunpack.c.l.b16 %v343
        %v440 = vunpack.c.l.b16 %v344
        %v441 = vunpack.c.l.b16 %v345
        %v442 = vunpack.c.l.b16 %v346
        %v443 = vunpack.c.l.b16 %v347
        %v444 = vunpack.c.l.b16 %v348
        %v445 = vunpack.c.l.b16 %v349
        %v446 = vunpack.c.l.b16 %v350
        %v447 = vunpack.c.l.b16 %v351
        %v448 = vunpack.c.l.b16 %v352
        %v449 = vunpack.c.l.b16 %v353
        %v450 = vunpack.c.l.b16 %v354
        %v451 = vunpack.c.l.b16 %v355
        %v452 = vpack.c.b16 %v437, %v436
        %v453 = vpack.c.b16 %v439, %v438
        %v454 = vpack.c.b16 %v441, %v440
        %v455 = vpack.c.b16 %v443, %v442
        %v456 = vpack.c.b16 %v445, %v444
        %v457 = vpack.c.b16 %v447, %v446
        %v458 = vpack.c.b16 %v449, %v448
        %v459 = vpack.c.b16 %v451, %v450
        %468 = vmatprep.subr.bf16.mxu0 0
        %469 = vmatpush1.bf16.xpose.msra.mxu0 %v459
        %470 = vmatprep.subr.bf16.mxu0 0
        %471 = vmatpush1.bf16.xpose.msra.mxu0 %v458
        %472 = vmatprep.subr.bf16.mxu0 0
        %473 = vmatpush1.bf16.xpose.msra.mxu0 %v457
        %474 = vmatprep.subr.bf16.mxu0 0
        %475 = vmatpush1.bf16.xpose.msra.mxu0 %v456
        %476 = vmatprep.subr.bf16.mxu0 0
        %477 = vmatpush1.bf16.xpose.msra.mxu0 %v455
        %478 = vmatprep.subr.bf16.mxu0 0
        %479 = vmatpush1.bf16.xpose.msra.mxu0 %v454
        %480 = vmatprep.subr.bf16.mxu0 0
        %481 = vmatpush1.bf16.xpose.msra.mxu0 %v453
        %482 = vmatprep.subr.bf16.mxu0 0
        %483 = vmatpush1.bf16.xpose.msra.mxu0 %v452
        %484 = vmatprep.subr.bf16.mxu0 0
        %485 = vmatpush2.bf16.xpose.msra.mxu0 0
        %486 = vmatprep.subr.bf16.mxu0 0
        %487 = vmatpush2.bf16.xpose.msra.mxu0 0
        %488 = vmatprep.subr.bf16.mxu0 0
        %489 = vmatpush2.bf16.xpose.msra.mxu0 0
        %490 = vmatprep.subr.bf16.mxu0 0
        %491 = vmatpush2.bf16.xpose.msra.mxu0 0
        %492 = vmatprep.subr.bf16.mxu0 0
        %493 = vmatpush2.bf16.xpose.msra.mxu0 0
        %494 = vmatprep.subr.bf16.mxu0 0
        %495 = vmatpush2.bf16.xpose.msra.mxu0 0
        %496 = vmatprep.subr.bf16.mxu0 0
        %497 = vmatpush2.bf16.xpose.msra.mxu0 0
        %498 = vmatprep.subr.bf16.mxu0 0
        %499 = vmatpush2.bf16.xpose.msra.mxu0 0
        %500 = vmatprep.mubr.bf16.mxu0 0
        %501 = vmatmul.mubr.bf16.gmra.mxu0 %v404
        %v502 = vpop.f32.mrf.mxu0
        %v503 = vadd.f32 0.0, %v502
        %v504 = vpop.f32.mrf.mxu0
        %v505 = vpop.f32.mrf.mxu0
        %v506 = vadd.f32 0.0, %v505
        %v507 = vpop.f32.mrf.mxu0
        %508 = vmatprep.mubr.bf16.mxu0 0
        %509 = vmatmul.mubr.bf16.gmra.mxu0 %v405
        %v510 = vpop.f32.mrf.mxu0
        %v511 = vadd.f32 0.0, %v510
        %v512 = vpop.f32.mrf.mxu0
        %v513 = vpop.f32.mrf.mxu0
        %v514 = vadd.f32 0.0, %v513
        %v515 = vpop.f32.mrf.mxu0
        %516 = vmatprep.mubr.bf16.mxu0 0
        %517 = vmatmul.mubr.bf16.gmra.mxu0 %v406
        %v518 = vpop.f32.mrf.mxu0
        %v519 = vadd.f32 0.0, %v518
        %v520 = vpop.f32.mrf.mxu0
        %v521 = vpop.f32.mrf.mxu0
        %v522 = vadd.f32 0.0, %v521
        %v523 = vpop.f32.mrf.mxu0
        %524 = vmatprep.mubr.bf16.mxu0 0
        %525 = vmatmul.mubr.bf16.gmra.mxu0 %v407
        %v526 = vpop.f32.mrf.mxu0
        %v527 = vadd.f32 0.0, %v526
        %v528 = vpop.f32.mrf.mxu0
        %v529 = vpop.f32.mrf.mxu0
        %v530 = vadd.f32 0.0, %v529
        %v531 = vpop.f32.mrf.mxu0
        %532 = vmatprep.mubr.bf16.mxu0 0
        %533 = vmatmul.mubr.bf16.gmra.mxu0 %v408
        %v534 = vpop.f32.mrf.mxu0
        %v535 = vadd.f32 0.0, %v534
        %v536 = vpop.f32.mrf.mxu0
        %v537 = vpop.f32.mrf.mxu0
        %v538 = vadd.f32 0.0, %v537
        %v539 = vpop.f32.mrf.mxu0
        %540 = vmatprep.mubr.bf16.mxu0 0
        %541 = vmatmul.mubr.bf16.gmra.mxu0 %v409
        %v542 = vpop.f32.mrf.mxu0
        %v543 = vadd.f32 0.0, %v542
        %v544 = vpop.f32.mrf.mxu0
        %v545 = vpop.f32.mrf.mxu0
        %v546 = vadd.f32 0.0, %v545
        %v547 = vpop.f32.mrf.mxu0
        %548 = vmatprep.mubr.bf16.mxu0 0
        %549 = vmatmul.mubr.bf16.gmra.mxu0 %v410
        %v550 = vpop.f32.mrf.mxu0
        %v551 = vadd.f32 0.0, %v550
        %v552 = vpop.f32.mrf.mxu0
        %v553 = vpop.f32.mrf.mxu0
        %v554 = vadd.f32 0.0, %v553
        %v555 = vpop.f32.mrf.mxu0
        %556 = vmatprep.mubr.bf16.mxu0 0
        %557 = vmatmul.mubr.bf16.gmra.mxu0 %v411
        %v558 = vpop.f32.mrf.mxu0
        %v559 = vadd.f32 0.0, %v558
        %v560 = vpop.f32.mrf.mxu0
        %v561 = vpop.f32.mrf.mxu0
        %v562 = vadd.f32 0.0, %v561
        %v563 = vpop.f32.mrf.mxu0
        %564 = vdwg.mxu0
        %v565 = vmul.f32 %v503, %v503
        %v566 = vmul.f32 %v506, %v506
        %v567 = vmul.f32 %v511, %v511
        %v568 = vmul.f32 %v514, %v514
        %v569 = vmul.f32 %v519, %v519
        %v570 = vmul.f32 %v522, %v522
        %v571 = vmul.f32 %v527, %v527
        %v572 = vmul.f32 %v530, %v530
        %v573 = vmul.f32 %v535, %v535
        %v574 = vmul.f32 %v538, %v538
        %v575 = vmul.f32 %v543, %v543
        %v576 = vmul.f32 %v546, %v546
        %v577 = vmul.f32 %v551, %v551
        %v578 = vmul.f32 %v554, %v554
        %v579 = vmul.f32 %v559, %v559
        %v580 = vmul.f32 %v562, %v562
        %v581 = vmul.f32 %v503, %v565
        %v582 = vmul.f32 %v506, %v566
        %v583 = vmul.f32 %v511, %v567
        %v584 = vmul.f32 %v514, %v568
        %v585 = vmul.f32 %v519, %v569
        %v586 = vmul.f32 %v522, %v570
        %v587 = vmul.f32 %v527, %v571
        %v588 = vmul.f32 %v530, %v572
        %v589 = vmul.f32 %v535, %v573
        %v590 = vmul.f32 %v538, %v574
        %v591 = vmul.f32 %v543, %v575
        %v592 = vmul.f32 %v546, %v576
        %v593 = vmul.f32 %v551, %v577
        %v594 = vmul.f32 %v554, %v578
        %v595 = vmul.f32 %v559, %v579
        %v596 = vmul.f32 %v562, %v580
        %v597 = vmul.f32 %v581, 0.044715
        %v598 = vmul.f32 %v582, 0.044715
        %v599 = vmul.f32 %v583, 0.044715
        %v600 = vmul.f32 %v584, 0.044715
        %v601 = vmul.f32 %v585, 0.044715
        %v602 = vmul.f32 %v586, 0.044715
        %v603 = vmul.f32 %v587, 0.044715
        %v604 = vmul.f32 %v588, 0.044715
        %v605 = vmul.f32 %v589, 0.044715
        %v606 = vmul.f32 %v590, 0.044715
        %v607 = vmul.f32 %v591, 0.044715
        %v608 = vmul.f32 %v592, 0.044715
        %v609 = vmul.f32 %v593, 0.044715
        %v610 = vmul.f32 %v594, 0.044715
        %v611 = vmul.f32 %v595, 0.044715
        %v612 = vmul.f32 %v596, 0.044715
        %v613 = vadd.f32 %v503, %v597
        %v614 = vadd.f32 %v506, %v598
        %v615 = vadd.f32 %v511, %v599
        %v616 = vadd.f32 %v514, %v600
        %v617 = vadd.f32 %v519, %v601
        %v618 = vadd.f32 %v522, %v602
        %v619 = vadd.f32 %v527, %v603
        %v620 = vadd.f32 %v530, %v604
        %v621 = vadd.f32 %v535, %v605
        %v622 = vadd.f32 %v538, %v606
        %v623 = vadd.f32 %v543, %v607
        %v624 = vadd.f32 %v546, %v608
        %v625 = vadd.f32 %v551, %v609
        %v626 = vadd.f32 %v554, %v610
        %v627 = vadd.f32 %v559, %v611
        %v628 = vadd.f32 %v562, %v612
        %v629 = vmul.f32 %v613, 0.7978846
        %v630 = vmul.f32 %v614, 0.7978846
        %v631 = vmul.f32 %v615, 0.7978846
        %v632 = vmul.f32 %v616, 0.7978846
        %v633 = vmul.f32 %v617, 0.7978846
        %v634 = vmul.f32 %v618, 0.7978846
        %v635 = vmul.f32 %v619, 0.7978846
        %v636 = vmul.f32 %v620, 0.7978846
        %v637 = vmul.f32 %v621, 0.7978846
        %v638 = vmul.f32 %v622, 0.7978846
        %v639 = vmul.f32 %v623, 0.7978846
        %v640 = vmul.f32 %v624, 0.7978846
        %v641 = vmul.f32 %v625, 0.7978846
        %v642 = vmul.f32 %v626, 0.7978846
        %v643 = vmul.f32 %v627, 0.7978846
        %v644 = vmul.f32 %v628, 0.7978846
        %v645 = vtanh.pop %v629
        %v646 = vtanh.pop %v630
        %v647 = vtanh.pop %v631
        %v648 = vtanh.pop %v632
        %v649 = vtanh.pop %v633
        %v650 = vtanh.pop %v634
        %v651 = vtanh.pop %v635
        %v652 = vtanh.pop %v636
        %v653 = vtanh.pop %v637
        %v654 = vtanh.pop %v638
        %v655 = vtanh.pop %v639
        %v656 = vtanh.pop %v640
        %v657 = vtanh.pop %v641
        %v658 = vtanh.pop %v642
        %v659 = vtanh.pop %v643
        %v660 = vtanh.pop %v644
        %v661 = vadd.f32 %v645, 1.0
        %v662 = vadd.f32 %v646, 1.0
        %v663 = vadd.f32 %v647, 1.0
        %v664 = vadd.f32 %v648, 1.0
        %v665 = vadd.f32 %v649, 1.0
        %v666 = vadd.f32 %v650, 1.0
        %v667 = vadd.f32 %v651, 1.0
        %v668 = vadd.f32 %v652, 1.0
        %v669 = vadd.f32 %v653, 1.0
        %v670 = vadd.f32 %v654, 1.0
        %v671 = vadd.f32 %v655, 1.0
        %v672 = vadd.f32 %v656, 1.0
        %v673 = vadd.f32 %v657, 1.0
        %v674 = vadd.f32 %v658, 1.0
        %v675 = vadd.f32 %v659, 1.0
        %v676 = vadd.f32 %v660, 1.0
        %v677 = vmul.f32 %v661, 0.5
        %v678 = vmul.f32 %v662, 0.5
        %v679 = vmul.f32 %v663, 0.5
        %v680 = vmul.f32 %v664, 0.5
        %v681 = vmul.f32 %v665, 0.5
        %v682 = vmul.f32 %v666, 0.5
        %v683 = vmul.f32 %v667, 0.5
        %v684 = vmul.f32 %v668, 0.5
        %v685 = vmul.f32 %v669, 0.5
        %v686 = vmul.f32 %v670, 0.5
        %v687 = vmul.f32 %v671, 0.5
        %v688 = vmul.f32 %v672, 0.5
        %v689 = vmul.f32 %v673, 0.5
        %v690 = vmul.f32 %v674, 0.5
        %v691 = vmul.f32 %v675, 0.5
        %v692 = vmul.f32 %v676, 0.5
        %v693 = vmul.f32 %v503, %v677
        %v694 = vmul.f32 %v506, %v678
        %v695 = vmul.f32 %v511, %v679
        %v696 = vmul.f32 %v514, %v680
        %v697 = vmul.f32 %v519, %v681
        %v698 = vmul.f32 %v522, %v682
        %v699 = vmul.f32 %v527, %v683
        %v700 = vmul.f32 %v530, %v684
        %v701 = vmul.f32 %v535, %v685
        %v702 = vmul.f32 %v538, %v686
        %v703 = vmul.f32 %v543, %v687
        %v704 = vmul.f32 %v546, %v688
        %v705 = vmul.f32 %v551, %v689
        %v706 = vmul.f32 %v554, %v690
        %v707 = vmul.f32 %v559, %v691
        %v708 = vmul.f32 %v562, %v692
        %v709 = vld [vmem:[#allocation2] sm:$0xff]
        %v710 = vld [vmem:[#allocation2 + $0x8] sm:$0xff]
        %v711 = vld [vmem:[#allocation2 + $0x10] sm:$0xff]
        %v712 = vld [vmem:[#allocation2 + $0x18] sm:$0xff]
        %v713 = vld [vmem:[#allocation2 + $0x20] sm:$0xff]
        %v714 = vld [vmem:[#allocation2 + $0x28] sm:$0xff]
        %v715 = vld [vmem:[#allocation2 + $0x30] sm:$0xff]
        %v716 = vld [vmem:[#allocation2 + $0x38] sm:$0xff]
        %v717 = vld [vmem:[#allocation2 + $0x40] sm:$0xff]
        %v718 = vld [vmem:[#allocation2 + $0x48] sm:$0xff]
        %v719 = vld [vmem:[#allocation2 + $0x50] sm:$0xff]
        %v720 = vld [vmem:[#allocation2 + $0x58] sm:$0xff]
        %v721 = vld [vmem:[#allocation2 + $0x60] sm:$0xff]
        %v722 = vld [vmem:[#allocation2 + $0x68] sm:$0xff]
        %v723 = vld [vmem:[#allocation2 + $0x70] sm:$0xff]
        %v724 = vld [vmem:[#allocation2 + $0x78] sm:$0xff]
        %v725 = vpack.c.bf16 %v694, %v693
        %v726 = vpack.c.bf16 %v696, %v695
        %v727 = vpack.c.bf16 %v698, %v697
        %v728 = vpack.c.bf16 %v700, %v699
        %v729 = vpack.c.bf16 %v702, %v701
        %v730 = vpack.c.bf16 %v704, %v703
        %v731 = vpack.c.bf16 %v706, %v705
        %v732 = vpack.c.bf16 %v708, %v707
        %v749 = vunpack.c.l.b16 %v356
        %v750 = vunpack.c.l.b16 %v357
        %v751 = vunpack.c.l.b16 %v358
        %v752 = vunpack.c.l.b16 %v359
        %v753 = vunpack.c.l.b16 %v360
        %v754 = vunpack.c.l.b16 %v361
        %v755 = vunpack.c.l.b16 %v362
        %v756 = vunpack.c.l.b16 %v363
        %v757 = vunpack.c.l.b16 %v364
        %v758 = vunpack.c.l.b16 %v365
        %v759 = vunpack.c.l.b16 %v366
        %v760 = vunpack.c.l.b16 %v367
        %v761 = vunpack.c.l.b16 %v368
        %v762 = vunpack.c.l.b16 %v369
        %v763 = vunpack.c.l.b16 %v370
        %v764 = vunpack.c.l.b16 %v371
        %v765 = vpack.c.b16 %v750, %v749
        %v766 = vpack.c.b16 %v752, %v751
        %v767 = vpack.c.b16 %v754, %v753
        %v768 = vpack.c.b16 %v756, %v755
        %v769 = vpack.c.b16 %v758, %v757
        %v770 = vpack.c.b16 %v760, %v759
        %v771 = vpack.c.b16 %v762, %v761
        %v772 = vpack.c.b16 %v764, %v763
        %781 = vmatprep.subr.bf16.mxu0 0
        %782 = vmatpush1.bf16.msra.mxu0 %v772
        %783 = vmatprep.subr.bf16.mxu0 0
        %784 = vmatpush1.bf16.msra.mxu0 %v771
        %785 = vmatprep.subr.bf16.mxu0 0
        %786 = vmatpush1.bf16.msra.mxu0 %v770
        %787 = vmatprep.subr.bf16.mxu0 0
        %788 = vmatpush1.bf16.msra.mxu0 %v769
        %789 = vmatprep.subr.bf16.mxu0 0
        %790 = vmatpush1.bf16.msra.mxu0 %v768
        %791 = vmatprep.subr.bf16.mxu0 0
        %792 = vmatpush1.bf16.msra.mxu0 %v767
        %793 = vmatprep.subr.bf16.mxu0 0
        %794 = vmatpush1.bf16.msra.mxu0 %v766
        %795 = vmatprep.subr.bf16.mxu0 0
        %796 = vmatpush1.bf16.msra.mxu0 %v765
        %797 = vmatprep.subr.bf16.mxu0 0
        %798 = vmatpush2.bf16.msra.mxu0 0
        %799 = vmatprep.subr.bf16.mxu0 0
        %800 = vmatpush2.bf16.msra.mxu0 0
        %801 = vmatprep.subr.bf16.mxu0 0
        %802 = vmatpush2.bf16.msra.mxu0 0
        %803 = vmatprep.subr.bf16.mxu0 0
        %804 = vmatpush2.bf16.msra.mxu0 0
        %805 = vmatprep.subr.bf16.mxu0 0
        %806 = vmatpush2.bf16.msra.mxu0 0
        %807 = vmatprep.subr.bf16.mxu0 0
        %808 = vmatpush2.bf16.msra.mxu0 0
        %809 = vmatprep.subr.bf16.mxu0 0
        %810 = vmatpush2.bf16.msra.mxu0 0
        %811 = vmatprep.subr.bf16.mxu0 0
        %812 = vmatpush2.bf16.msra.mxu0 0
        %813 = vmatprep.mubr.bf16.mxu0 0
        %814 = vmatmul.mubr.bf16.gmra.mxu0 %v725
        %v815 = vpop.f32.mrf.mxu0
        %v816 = vadd.f32 0.0, %v815
        %v817 = vpop.f32.mrf.mxu0
        %v818 = vpop.f32.mrf.mxu0
        %v819 = vadd.f32 0.0, %v818
        %v820 = vpop.f32.mrf.mxu0
        %821 = vmatprep.mubr.bf16.mxu0 0
        %822 = vmatmul.mubr.bf16.gmra.mxu0 %v726
        %v823 = vpop.f32.mrf.mxu0
        %v824 = vadd.f32 0.0, %v823
        %v825 = vpop.f32.mrf.mxu0
        %v826 = vpop.f32.mrf.mxu0
        %v827 = vadd.f32 0.0, %v826
        %v828 = vpop.f32.mrf.mxu0
        %829 = vmatprep.mubr.bf16.mxu0 0
        %830 = vmatmul.mubr.bf16.gmra.mxu0 %v727
        %v831 = vpop.f32.mrf.mxu0
        %v832 = vadd.f32 0.0, %v831
        %v833 = vpop.f32.mrf.mxu0
        %v834 = vpop.f32.mrf.mxu0
        %v835 = vadd.f32 0.0, %v834
        %v836 = vpop.f32.mrf.mxu0
        %837 = vmatprep.mubr.bf16.mxu0 0
        %838 = vmatmul.mubr.bf16.gmra.mxu0 %v728
        %v839 = vpop.f32.mrf.mxu0
        %v840 = vadd.f32 0.0, %v839
        %v841 = vpop.f32.mrf.mxu0
        %v842 = vpop.f32.mrf.mxu0
        %v843 = vadd.f32 0.0, %v842
        %v844 = vpop.f32.mrf.mxu0
        %845 = vmatprep.mubr.bf16.mxu0 0
        %846 = vmatmul.mubr.bf16.gmra.mxu0 %v729
        %v847 = vpop.f32.mrf.mxu0
        %v848 = vadd.f32 0.0, %v847
        %v849 = vpop.f32.mrf.mxu0
        %v850 = vpop.f32.mrf.mxu0
        %v851 = vadd.f32 0.0, %v850
        %v852 = vpop.f32.mrf.mxu0
        %853 = vmatprep.mubr.bf16.mxu0 0
        %854 = vmatmul.mubr.bf16.gmra.mxu0 %v730
        %v855 = vpop.f32.mrf.mxu0
        %v856 = vadd.f32 0.0, %v855
        %v857 = vpop.f32.mrf.mxu0
        %v858 = vpop.f32.mrf.mxu0
        %v859 = vadd.f32 0.0, %v858
        %v860 = vpop.f32.mrf.mxu0
        %861 = vmatprep.mubr.bf16.mxu0 0
        %862 = vmatmul.mubr.bf16.gmra.mxu0 %v731
        %v863 = vpop.f32.mrf.mxu0
        %v864 = vadd.f32 0.0, %v863
        %v865 = vpop.f32.mrf.mxu0
        %v866 = vpop.f32.mrf.mxu0
        %v867 = vadd.f32 0.0, %v866
        %v868 = vpop.f32.mrf.mxu0
        %869 = vmatprep.mubr.bf16.mxu0 0
        %870 = vmatmul.mubr.bf16.gmra.mxu0 %v732
        %v871 = vpop.f32.mrf.mxu0
        %v872 = vadd.f32 0.0, %v871
        %v873 = vpop.f32.mrf.mxu0
        %v874 = vpop.f32.mrf.mxu0
        %v875 = vadd.f32 0.0, %v874
        %v876 = vpop.f32.mrf.mxu0
        %877 = vdwg.mxu0
        %v878 = vadd.f32 %v709, %v816
        %v879 = vadd.f32 %v710, %v819
        %v880 = vadd.f32 %v711, %v824
        %v881 = vadd.f32 %v712, %v827
        %v882 = vadd.f32 %v713, %v832
        %v883 = vadd.f32 %v714, %v835
        %v884 = vadd.f32 %v715, %v840
        %v885 = vadd.f32 %v716, %v843
        %v886 = vadd.f32 %v717, %v848
        %v887 = vadd.f32 %v718, %v851
        %v888 = vadd.f32 %v719, %v856
        %v889 = vadd.f32 %v720, %v859
        %v890 = vadd.f32 %v721, %v864
        %v891 = vadd.f32 %v722, %v867
        %v892 = vadd.f32 %v723, %v872
        %v893 = vadd.f32 %v724, %v875
        %894 = vst [vmem:[#allocation2] sm:$0xff] %v878
        %895 = vst [vmem:[#allocation2 + $0x8] sm:$0xff] %v879
        %896 = vst [vmem:[#allocation2 + $0x10] sm:$0xff] %v880
        %897 = vst [vmem:[#allocation2 + $0x18] sm:$0xff] %v881
        %898 = vst [vmem:[#allocation2 + $0x20] sm:$0xff] %v882
        %899 = vst [vmem:[#allocation2 + $0x28] sm:$0xff] %v883
        %900 = vst [vmem:[#allocation2 + $0x30] sm:$0xff] %v884
        %901 = vst [vmem:[#allocation2 + $0x38] sm:$0xff] %v885
        %902 = vst [vmem:[#allocation2 + $0x40] sm:$0xff] %v886
        %903 = vst [vmem:[#allocation2 + $0x48] sm:$0xff] %v887
        %904 = vst [vmem:[#allocation2 + $0x50] sm:$0xff] %v888
        %905 = vst [vmem:[#allocation2 + $0x58] sm:$0xff] %v889
        %906 = vst [vmem:[#allocation2 + $0x60] sm:$0xff] %v890
        %907 = vst [vmem:[#allocation2 + $0x68] sm:$0xff] %v891
        %908 = vst [vmem:[#allocation2 + $0x70] sm:$0xff] %v892
        %909 = vst [vmem:[#allocation2 + $0x78] sm:$0xff] %v893
        %p910 = scmp.eq.s32.totalorder %s33, 1
        // Predicated region
        $region49: #{tpu_custom_call.1} parent=31 // pred_check
          %p911 = pneg %p910
        $region50: #{tpu_custom_call.1} parent=31 // pred_check_branch
          %913 = sbr.rel (%p911) target = $region52
        $region51: #{tpu_custom_call.1} parent=31 // pred_region
          %v914 = vld [vmem:[#allocation2] sm:$0xff]
          %v915 = vld [vmem:[#allocation2 + $0x8] sm:$0xff]
          %v916 = vld [vmem:[#allocation2 + $0x10] sm:$0xff]
          %v917 = vld [vmem:[#allocation2 + $0x18] sm:$0xff]
          %v918 = vld [vmem:[#allocation2 + $0x20] sm:$0xff]
          %v919 = vld [vmem:[#allocation2 + $0x28] sm:$0xff]
          %v920 = vld [vmem:[#allocation2 + $0x30] sm:$0xff]
          %v921 = vld [vmem:[#allocation2 + $0x38] sm:$0xff]
          %v922 = vld [vmem:[#allocation2 + $0x40] sm:$0xff]
          %v923 = vld [vmem:[#allocation2 + $0x48] sm:$0xff]
          %v924 = vld [vmem:[#allocation2 + $0x50] sm:$0xff]
          %v925 = vld [vmem:[#allocation2 + $0x58] sm:$0xff]
          %v926 = vld [vmem:[#allocation2 + $0x60] sm:$0xff]
          %v927 = vld [vmem:[#allocation2 + $0x68] sm:$0xff]
          %v928 = vld [vmem:[#allocation2 + $0x70] sm:$0xff]
          %v929 = vld [vmem:[#allocation2 + $0x78] sm:$0xff]
          %930 = vst [vmem:[%s296] sm:$0xff] %v914
          %931 = vst [vmem:[%s296 + $0x8] sm:$0xff] %v915
          %932 = vst [vmem:[%s296 + $0x10] sm:$0xff] %v916
          %933 = vst [vmem:[%s296 + $0x18] sm:$0xff] %v917
          %934 = vst [vmem:[%s296 + $0x20] sm:$0xff] %v918
          %935 = vst [vmem:[%s296 + $0x28] sm:$0xff] %v919
          %936 = vst [vmem:[%s296 + $0x30] sm:$0xff] %v920
          %937 = vst [vmem:[%s296 + $0x38] sm:$0xff] %v921
          %938 = vst [vmem:[%s296 + $0x40] sm:$0xff] %v922
          %939 = vst [vmem:[%s296 + $0x48] sm:$0xff] %v923
          %940 = vst [vmem:[%s296 + $0x50] sm:$0xff] %v924
          %941 = vst [vmem:[%s296 + $0x58] sm:$0xff] %v925
          %942 = vst [vmem:[%s296 + $0x60] sm:$0xff] %v926
          %943 = vst [vmem:[%s296 + $0x68] sm:$0xff] %v927
          %944 = vst [vmem:[%s296 + $0x70] sm:$0xff] %v928
          %945 = vst [vmem:[%s296 + $0x78] sm:$0xff] %v929
        $region52: #{tpu_custom_call.1} parent=31 // pred_fallthru
          _
        %s946 = sand.u32 %s134, 1
        %s947 = scalar_lea.sflag [#allocation7], %s946
        %s948 = sand.u32 %s134, 1
        %s949 = smul.addr %s948, 128
        %s950 = scalar_lea.vmem [#allocation11], %s949
        // Predicated region
        $region53: #{tpu_custom_call.1} parent=31 // pred_check
          %p951 = pneg %p144
        $region54: #{tpu_custom_call.1} parent=31 // pred_check_branch
          %953 = sbr.rel (%p951) target = $region56
        $region55: #{tpu_custom_call.1} parent=31 // pred_region
          %s954 = smul.u32 16, %s32
          %s956 = ssub.s32 2048, 2048
          %957 = vsyncadd %s947, %s956
          %s958 = smul.addr %s954, 128
          %s959 = scalar_lea.hbm %s4, %s958
          %s960 = sshll.u32 %s950, 4
          %s961 = int_to_ptr.vmem [resolvable:$true] %s960
          %966 = dma.vmem_to_hbm [thread:$0]  %s961, 2048, %s959, %s947, 128, 128, 8
        $region56: #{tpu_custom_call.1} parent=31 // pred_fallthru
          _
      $region32: #{tpu_custom_call.1} parent=5 // pred_fallthru
        _
      %p967 = scmp.le.s32.totalorder 2, %s23
      // Predicated region
      $region57: #{tpu_custom_call.1} parent=5 // pred_check
        %p968 = pneg %p967
      $region58: #{tpu_custom_call.1} parent=5 // pred_check_branch
        %970 = sbr.rel (%p968) target = $region60
      $region59: #{tpu_custom_call.1} parent=5 // pred_region
        %s971 = ssub.s32 %s23, 2
        // Predicated region
        $region61: #{tpu_custom_call.1} parent=59 // pred_check
          %p972 = pneg %p150
        $region62: #{tpu_custom_call.1} parent=59 // pred_check_branch
          %974 = sbr.rel (%p972) target = $region64
        $region63: #{tpu_custom_call.1} parent=59 // pred_region
          %s975 = sand.u32 %s135, 1
          %s976 = scalar_lea.sflag [#allocation7], %s975
          %s977 = sand.u32 %s135, 1
          %s978 = smul.addr %s977, 128
          %s979 = scalar_lea.vmem [#allocation11], %s978
          %980 = dma.done %s976, 2048
        $region64: #{tpu_custom_call.1} parent=59 // pred_fallthru
          _
      $region60: #{tpu_custom_call.1} parent=5 // pred_fallthru
        _
    $region6: #{tpu_custom_call.1} parent=1 // loop_footer
      %s27 = sadd.s32 1, %s23
    $region7: #{tpu_custom_call.1} parent=1 // loop_footer_branch
      %22 = sbr.rel target = $region3
    $region8: #{tpu_custom_call.1} parent=1 // loop_exit
      _
    %981 = vsyncpa [#allocation6], 1
    %s982 = scalar_lea.sflag [#allocation6], 1
    %983 = vsyncpa %s982, 1
    %984 = vsyncpa [#allocation9], 1
    %s985 = scalar_lea.sflag [#allocation9], 1
    %986 = vsyncpa %s985, 1
    %987 = vsyncpa [#allocation7], 1
    %s988 = scalar_lea.sflag [#allocation7], 1
    %989 = vsyncpa %s988, 1

</llo_original>
